<compile_context>
chip_gen: v6e
topology: v6e:2x2x1
jax: 0.10.0
libtpu: 0.0.40
codegen_flags: <defaults>
</compile_context>

<pallas_src>
import numpy as np
import jax
import jax.numpy as jnp
from jax.experimental import pallas as pl
from jax.experimental.pallas import tpu as pltpu  # noqa: F401  (TPU backend)


# --------------------------------------------------------------------------
# Buffer construction (== PositionalEncoding._get_sinusoid_encoding_table).
# Computed once at "module init" time on host, exactly like register_buffer.
# --------------------------------------------------------------------------
def sinusoid_encoding_table(n_position, d_hid):
    pos = np.arange(n_position, dtype=np.float64)[:, None]          # (P, 1)
    hid = np.arange(d_hid, dtype=np.float64)[None, :]                # (1, D)
    angle = pos / np.power(10000.0, 2.0 * np.floor(hid / 2.0) / d_hid)
    table = np.empty((n_position, d_hid), dtype=np.float64)
    table[:, 0::2] = np.sin(angle[:, 0::2])
    table[:, 1::2] = np.cos(angle[:, 1::2])
    return jnp.asarray(table, dtype=jnp.float32)                     # (P, D)


# --------------------------------------------------------------------------
# Kernel: x (B, L*D) + pos (1, L*D) broadcast over the batch (sublane) dim.
# Whole problem lives in VMEM in a single program — no grid, no pipelining
# overhead, one HBM read per operand and one lane-dense HBM write.
# --------------------------------------------------------------------------
def _add_pos_kernel(x_ref, pos_ref, o_ref):
    o_ref[...] = x_ref[...] + pos_ref[...]


@jax.jit
def positional_encoding(x, pos_table):
    """x: (B, L, D) float32; pos_table: (n_position, D) float32."""
    B, L, D = x.shape
    pos = pos_table[:L, :]                       # static slice (== [:, :x.size(1)])

    # Lane-dense flatten: last dim L*D (256 at the demo shapes) is a multiple
    # of 128, so VPU ops and the output store use full vregs instead of
    # 32/128-lane masked ops.  Reshapes over contiguous trailing dims are free.
    x2d = x.reshape(B, L * D)
    pos2d = pos.reshape(1, L * D)

    out = pl.pallas_call(
        _add_pos_kernel,
        out_shape=jax.ShapeDtypeStruct((B, L * D), x.dtype),
        grid=(1,),
        in_specs=[
            pl.BlockSpec((B, L * D), lambda i: (0, 0)),
            pl.BlockSpec((1, L * D), lambda i: (0, 0)),
        ],
        out_specs=pl.BlockSpec((B, L * D), lambda i: (0, 0)),
    )(x2d, pos2d)
    return out.reshape(B, L, D)


if __name__ == "__main__":
    # Small shapes consistent with the module: batch=2, seq=8, d_hid=32,
    # buffer built for n_position=200 (only the first seq rows are used).
    B, L, D = 2, 8, 32
    n_position = 200

    key = jax.random.PRNGKey(0)
    x = jax.random.normal(key, (B, L, D), jnp.float32)
    pos_table = sinusoid_encoding_table(n_position, D)

    out = positional_encoding(x, pos_table)
    out = jax.block_until_ready(out)
    assert out.shape == (B, L, D), out.shape

    # Pure-JAX reference check (forward semantics: x + pos_table[:, :L]).
    ref = x + pos_table[None, :L, :]
    assert jnp.allclose(out, ref, atol=1e-6, rtol=1e-6), "positional encoding mismatch"

    print("KERNEL_OK")
</pallas_src>

<mosaic_0001>
module attributes {stable_mosaic.version = 11 : i64} {
  func.func @_add_pos_kernel(%arg0: i32, %arg1: memref<2x256xf32, #tpu.memory_space<vmem>>, %arg2: memref<1x256xf32, #tpu.memory_space<vmem>>, %arg3: memref<2x256xf32, #tpu.memory_space<vmem>>) attributes {dimension_semantics = [#tpu.dimension_semantics<arbitrary>], iteration_bounds = array<i64: 1>, scalar_prefetch = 0 : i64, scratch_operands = 0 : i64, tpu.core_type = #tpu.core_type<tc>, window_params = [{pipeline_mode = #tpu.pipeline_mode<synchronous>, transform_indices = @transform_0, window_bounds = array<i64: 2, 256>}, {pipeline_mode = #tpu.pipeline_mode<synchronous>, transform_indices = @transform_1, window_bounds = array<i64: 1, 256>}, {pipeline_mode = #tpu.pipeline_mode<synchronous>, transform_indices = @transform_2, window_bounds = array<i64: 2, 256>}]} {
    %c0 = arith.constant 0 : index
    %c0_0 = arith.constant 0 : index
    %0 = vector.load %arg1[%c0, %c0_0] : memref<2x256xf32, #tpu.memory_space<vmem>>, vector<2x256xf32>
    %c0_1 = arith.constant 0 : index
    %c0_2 = arith.constant 0 : index
    %1 = vector.load %arg2[%c0_1, %c0_2] : memref<1x256xf32, #tpu.memory_space<vmem>>, vector<1x256xf32>
    %2 = vector.broadcast %1 : vector<1x256xf32> to vector<2x256xf32>
    %3 = arith.addf %0, %2 : vector<2x256xf32>
    %c0_3 = arith.constant 0 : index
    %c0_4 = arith.constant 0 : index
    %4 = vector.load %arg3[%c0_3, %c0_4] : memref<2x256xf32, #tpu.memory_space<vmem>>, vector<2x256xf32>
    tpu.vector_store %arg3[%c0_3, %c0_4], %3 {strides = array<i32>} : memref<2x256xf32, #tpu.memory_space<vmem>>, vector<2x256xf32>,
    return
  }
  func.func @transform_0(%arg0: i32) -> (i32, i32) {
    %c0_i32 = arith.constant 0 : i32
    %c0_i32_0 = arith.constant 0 : i32
    %c0_i32_1 = arith.constant 0 : i32
    return %c0_i32, %c0_i32_0 : i32, i32
  }
  func.func @transform_1(%arg0: i32) -> (i32, i32) {
    %c0_i32 = arith.constant 0 : i32
    %c0_i32_0 = arith.constant 0 : i32
    %c0_i32_1 = arith.constant 0 : i32
    return %c0_i32, %c0_i32_0 : i32, i32
  }
  func.func @transform_2(%arg0: i32) -> (i32, i32) {
    %c0_i32 = arith.constant 0 : i32
    %c0_i32_0 = arith.constant 0 : i32
    %c0_i32_1 = arith.constant 0 : i32
    return %c0_i32, %c0_i32_0 : i32, i32
  }
}

</mosaic_0001>

<llo_original>
// kernel: positional_encoding.1
$region0: #{positional_encoding.1}
  #allocation0 [shape = 'u32[]', space=smem, size = 0x4, offset = 0x4, fixed_abs, tag = 'smem constant byte address 0x4 - core index']
  #allocation1 [shape = 'u32[144,128]{1,0:T(1,128)}', space=vmem, size = 0x12000, scoped, tag = 'internal scratch']
  %s0 = inlined_call_operand.vmem [shape: f32[2,256], index: 0, kind: input, shape index: {}]
  %s1 = inlined_call_operand.vmem [shape: f32[1,256], index: 1, kind: input, shape index: {}]
  %s2 = inlined_call_operand.vmem [shape: f32[2,256], index: 2, kind: output, shape index: {}]
  %s3 = sld [smem:[#allocation0]]
  $region18: #{positional_encoding.1} parent=0
    _
  %s5 = ssub.s32 1, %s3
  %s6 = scalar_select 0, %s5, %s3
  // Predicated region
  $region2: #{positional_encoding.1} parent=0 // pred_check
    _
  $region3: #{positional_encoding.1} parent=0 // pred_check_branch
    %8 = sbr.rel (0) target = $region5
  $region4: #{positional_encoding.1} parent=0 // pred_region
    _
  $region5: #{positional_encoding.1} parent=0 // pred_fallthru
    _
  // Predicated region
  $region6: #{positional_encoding.1} parent=0 // pred_check
    _
  $region7: #{positional_encoding.1} parent=0 // pred_check_branch
    %10 = sbr.rel (0) target = $region9
  $region8: #{positional_encoding.1} parent=0 // pred_region
    _
  $region9: #{positional_encoding.1} parent=0 // pred_fallthru
    _
  %v11 = vld [vmem:[%s0] sm:$0xf]
  %v12 = vld [vmem:[%s1] sm:$0x3]
  %v14 = vlaneseq
  %v15 = vshrl.u32 %v14, 7
  %v16 = vsub.s32 0, %v15
  %v17 = vrot.slane %v12, %v16
  %v18 = vlaneseq
  %v19 = vshrl.u32 %v18, 7
  %v20 = vsub.s32 1, %v19
  %v21 = vrot.slane %v12, %v20
  %v22 = vcombine.low %v17, %v21
  %v24 = vunpack.c.l.s4 1983009808
  %v25 = vunpack.c.0.s8 %v24
  %v26 = vlaneseq
  %v27 = vshrl.u32 %v26, 7
  %v28 = vsub.s32 %v25, %v27
  %v29 = vrot.slane %v22, %v28
  %v31 = vadd.f32 %v11, %v29
  %32 = vst [vmem:[%s2] sm:$0xf] %v31
  // Predicated region
  $region10: #{positional_encoding.1} parent=0 // pred_check
    _
  $region11: #{positional_encoding.1} parent=0 // pred_check_branch
    %34 = sbr.rel (0) target = $region13
  $region12: #{positional_encoding.1} parent=0 // pred_region
    _
  $region13: #{positional_encoding.1} parent=0 // pred_fallthru
    _
  // Predicated region
  $region14: #{positional_encoding.1} parent=0 // pred_check
    _
  $region15: #{positional_encoding.1} parent=0 // pred_check_branch
    %36 = sbr.rel (0) target = $region17
  $region16: #{positional_encoding.1} parent=0 // pred_region
    _
  $region17: #{positional_encoding.1} parent=0 // pred_fallthru
    _

</llo_original>
